<compile_context>
chip_gen: v7x
topology: tpu7x:2x2x1
jax: 0.10.0
libtpu: 0.0.40
codegen_flags: <defaults>
</compile_context>

<pallas_src>
import math

import jax
import jax.numpy as jnp
from jax.experimental import pallas as pl
from jax.experimental.pallas import tpu as pltpu

_LANES = 1024          # lane-dense slab width (multiple of 128 and of 4)
_MAX_BLOCK_ROWS = 512  # 512 x 1024 f32 = 2 MiB per block
_MIN_PALLAS_ELEMS = 2048  # below this, pure-JAX is faster than kernel launch


def _round_up(x, m):
    return ((x + m - 1) // m) * m


def _clip_boxes_kernel(boxes_ref, upper_ref, out_ref):
    # boxes_ref: (TR, L) tile; upper_ref: (1, L) periodic upper bound row.
    boxes = boxes_ref[...]
    upper = upper_ref[...]
    lower = jnp.zeros((), boxes.dtype)
    out_ref[...] = jnp.minimum(jnp.maximum(boxes, lower), upper)


def _clip_boxes_ref(batch_imgs, batch_boxes):
    """Pure-JAX reference mirroring the PyTorch semantics."""
    h, w = batch_imgs.shape[2], batch_imgs.shape[3]
    b = jnp.maximum(batch_boxes, 0)
    upper = jnp.asarray([w - 1, h - 1, w - 1, h - 1], b.dtype)
    return jnp.minimum(b, upper)


def clip_boxes(batch_imgs, batch_boxes):
    """Pallas implementation of ClipBoxes.forward(batch_imgs, batch_boxes)."""
    h, w = batch_imgs.shape[2], batch_imgs.shape[3]
    dtype = batch_boxes.dtype
    total = int(math.prod(batch_boxes.shape))   # B * N * 4

    # Small inputs: kernel launch overhead dominates -> fused XLA path.
    if total < _MIN_PALLAS_ELEMS:
        return _clip_boxes_ref(batch_imgs, batch_boxes)

    L = _LANES
    rows = pl.cdiv(total, L)
    # Block rows: multiple of 8 (sublane), capped at _MAX_BLOCK_ROWS.
    tr = min(_MAX_BLOCK_ROWS, _round_up(rows, 8))
    rows_padded = _round_up(rows, tr)
    padded_total = rows_padded * L

    flat = batch_boxes.reshape(-1)
    if padded_total != total:
        flat = jnp.pad(flat, (0, padded_total - total))
    slab = flat.reshape(rows_padded, L)

    # Periodic upper bound along the lane axis: [W-1, H-1, W-1, H-1, ...].
    # (last-dim-of-4 pattern is preserved by the flatten since L % 4 == 0)
    upper_row = jnp.tile(
        jnp.asarray([w - 1, h - 1, w - 1, h - 1], dtype), L // 4
    ).reshape(1, L)

    itemsize = jnp.dtype(dtype).itemsize
    grid = (rows_padded // tr,)

    out = pl.pallas_call(
        _clip_boxes_kernel,
        out_shape=jax.ShapeDtypeStruct((rows_padded, L), dtype),
        grid=grid,
        in_specs=[
            pl.BlockSpec((tr, L), lambda i: (i, 0)),   # boxes slab tile
            pl.BlockSpec((1, L), lambda i: (0, 0)),    # upper-bound row (resident)
        ],
        out_specs=pl.BlockSpec((tr, L), lambda i: (i, 0)),
        input_output_aliases={0: 0},   # in-place clamp semantics
        compiler_params=pltpu.CompilerParams(
            dimension_semantics=("parallel",),
        ),
        cost_estimate=pl.CostEstimate(
            flops=2 * padded_total,
            transcendentals=0,
            bytes_accessed=2 * padded_total * itemsize + L * itemsize,
        ),
    )(slab, upper_row)

    out_flat = out.reshape(-1)
    if padded_total != total:
        out_flat = out_flat[:total]
    return out_flat.reshape(batch_boxes.shape)


if __name__ == "__main__":
    key = jax.random.PRNGKey(0)
    k_img, k_box = jax.random.split(key)

    B, C, H, W = 2, 3, 16, 16
    N = 1000  # FCOS max_detection_boxes_num -> realistic box count per image

    batch_imgs = jax.random.normal(k_img, (B, C, H, W), dtype=jnp.float32)
    # Boxes spanning negative and > (W-1) values so the clamp actually fires.
    batch_boxes = jax.random.uniform(
        k_box, (B, N, 4), minval=-10.0, maxval=30.0, dtype=jnp.float32
    )

    ref = _clip_boxes_ref(batch_imgs, batch_boxes)

    out = clip_boxes(batch_imgs, batch_boxes)
    out = jax.block_until_ready(out)

    assert out.shape == batch_boxes.shape
    assert out.dtype == batch_boxes.dtype
    assert jnp.allclose(out, ref), "Pallas ClipBoxes does not match reference"

    print("KERNEL_OK")
</pallas_src>

<mosaic_0001>
module attributes {stable_mosaic.version = 11 : i64} {
  func.func @_clip_boxes_kernel(%arg0: i32, %arg1: memref<8x1024xf32, #tpu.memory_space<vmem>>, %arg2: memref<1x1024xf32, #tpu.memory_space<vmem>>, %arg3: memref<8x1024xf32, #tpu.memory_space<vmem>>) attributes {dimension_semantics = [#tpu.dimension_semantics<parallel>], iteration_bounds = array<i64: 1>, scalar_prefetch = 0 : i64, scratch_operands = 0 : i64, tpu.core_type = #tpu.core_type<tc>, window_params = [{transform_indices = @transform_0, window_bounds = array<i64: 8, 1024>}, {pipeline_mode = #tpu.pipeline_mode<synchronous>, transform_indices = @transform_1, window_bounds = array<i64: 1, 1024>}, {transform_indices = @transform_2, window_bounds = array<i64: 8, 1024>}]} {
    %c0 = arith.constant 0 : index
    %c0_0 = arith.constant 0 : index
    %0 = vector.load %arg1[%c0, %c0_0] : memref<8x1024xf32, #tpu.memory_space<vmem>>, vector<8x1024xf32>
    %c0_1 = arith.constant 0 : index
    %c0_2 = arith.constant 0 : index
    %1 = vector.load %arg2[%c0_1, %c0_2] : memref<1x1024xf32, #tpu.memory_space<vmem>>, vector<1x1024xf32>
    %cst = arith.constant 0.000000e+00 : f32
    %2 = vector.broadcast %cst : f32 to vector<8x1024xf32>
    %3 = arith.maximumf %0, %2 : vector<8x1024xf32>
    %4 = vector.broadcast %1 : vector<1x1024xf32> to vector<8x1024xf32>
    %5 = arith.minimumf %3, %4 : vector<8x1024xf32>
    %c0_3 = arith.constant 0 : index
    %c0_4 = arith.constant 0 : index
    %6 = vector.load %arg3[%c0_3, %c0_4] : memref<8x1024xf32, #tpu.memory_space<vmem>>, vector<8x1024xf32>
    tpu.vector_store %arg3[%c0_3, %c0_4], %5 {strides = array<i32>} : memref<8x1024xf32, #tpu.memory_space<vmem>>, vector<8x1024xf32>,
    return
  }
  func.func @transform_0(%arg0: i32) -> (i32, i32) {
    %c0_i32 = arith.constant 0 : i32
    %c0_i32_0 = arith.constant 0 : i32
    return %arg0, %c0_i32 : i32, i32
  }
  func.func @transform_1(%arg0: i32) -> (i32, i32) {
    %c0_i32 = arith.constant 0 : i32
    %c0_i32_0 = arith.constant 0 : i32
    %c0_i32_1 = arith.constant 0 : i32
    return %c0_i32, %c0_i32_0 : i32, i32
  }
  func.func @transform_2(%arg0: i32) -> (i32, i32) {
    %c0_i32 = arith.constant 0 : i32
    %c0_i32_0 = arith.constant 0 : i32
    return %arg0, %c0_i32 : i32, i32
  }
}

</mosaic_0001>

<llo_original>
// kernel: tpu_custom_call.1
$region0: #{tpu_custom_call.1}
  #allocation0 [shape = 'u32[]', space=smem, size = 0x4, offset = 0x4, fixed_abs, tag = 'smem constant byte address 0x4 - core index']
  #allocation1 [shape = 'u32[144,128]{1,0:T(1,128)}', space=vmem, size = 0x12000, scoped, tag = 'internal scratch']
  %s0 = inlined_call_operand.hbm [shape: f32[8,1024], index: 0, kind: input, shape index: {}, may-alias: {0,2}]
  %s1 = inlined_call_operand.vmem [shape: f32[1,1024], index: 1, kind: input, shape index: {}]
  %s2 = inlined_call_operand.hbm [shape: f32[8,1024], index: 2, kind: output, shape index: {}, may-alias: {0,2}]
  %s3 = sld [smem:[#allocation0]]
  $region22: #{tpu_custom_call.1} parent=0
    _
  %s5 = ssub.s32 1, %s3
  %s6 = scalar_select 0, %s5, %s3
  $region1: #{tpu_custom_call.1} parent=0
    #allocation2 [shape = 'u8[32768]{0}', space=vmem, size = 0x8000, scoped, tag = 'input window, operand 0, single buffered']
    #allocation3 [shape = 's32[1]{0}', space=sflag, size = 0x4, scoped, tag = 'scoped memory for tpu_custom_call.1']
    #allocation4 [shape = 's32[1]{0}', space=sflag, size = 0x4, scoped, tag = 'scoped memory for tpu_custom_call.1']
    #allocation5 [shape = 'u8[32768]{0}', space=vmem, size = 0x8000, scoped, tag = 'output window, operand 0, single buffered']
    %7 = vsyncpa [#allocation3], 0
    %8 = vsyncpa [#allocation4], 0
    // Predicated region
    $region2: #{tpu_custom_call.1} parent=1 // pred_check
      _
    $region3: #{tpu_custom_call.1} parent=1 // pred_check_branch
      %10 = sbr.rel (0) target = $region5
    $region4: #{tpu_custom_call.1} parent=1 // pred_region
      %s12 = ssub.s32 1024, 1024
      %13 = vsyncadd [#allocation3], %s12
      %s15 = sshll.u32 [#allocation2], 4
      %s16 = int_to_ptr.vmem [resolvable:$true] %s15
      %18 = dma.hbm_to_vmem [thread:$0]  %s0, 1024, %s16, [#allocation3]
    $region5: #{tpu_custom_call.1} parent=1 // pred_fallthru
      _
    // Predicated region
    $region6: #{tpu_custom_call.1} parent=1 // pred_check
      _
    $region7: #{tpu_custom_call.1} parent=1 // pred_check_branch
      %20 = sbr.rel (0) target = $region9
    $region8: #{tpu_custom_call.1} parent=1 // pred_region
      _
    $region9: #{tpu_custom_call.1} parent=1 // pred_fallthru
      _
    // Predicated region
    $region10: #{tpu_custom_call.1} parent=1 // pred_check
      _
    $region11: #{tpu_custom_call.1} parent=1 // pred_check_branch
      %22 = sbr.rel (0) target = $region13
    $region12: #{tpu_custom_call.1} parent=1 // pred_region
      %23 = dma.done [#allocation3], 1024
    $region13: #{tpu_custom_call.1} parent=1 // pred_fallthru
      _
    %v24 = vld [vmem:[#allocation2] sm:$0xff]
    %v25 = vld [vmem:[#allocation2 + $0x8] sm:$0xff]
    %v26 = vld [vmem:[#allocation2 + $0x10] sm:$0xff]
    %v27 = vld [vmem:[#allocation2 + $0x18] sm:$0xff]
    %v28 = vld [vmem:[#allocation2 + $0x20] sm:$0xff]
    %v29 = vld [vmem:[#allocation2 + $0x28] sm:$0xff]
    %v30 = vld [vmem:[#allocation2 + $0x30] sm:$0xff]
    %v31 = vld [vmem:[#allocation2 + $0x38] sm:$0xff]
    %v32 = vld [vmem:[%s1] sm:$0xff]
    %v33 = vmax.f32 %v24, 0.0
    %v34 = vmax.f32 %v25, 0.0
    %v35 = vmax.f32 %v26, 0.0
    %v36 = vmax.f32 %v27, 0.0
    %v37 = vmax.f32 %v28, 0.0
    %v38 = vmax.f32 %v29, 0.0
    %v39 = vmax.f32 %v30, 0.0
    %v40 = vmax.f32 %v31, 0.0
    %v42 = vlaneseq
    %v43 = vshrl.u32 %v42, 7
    %v44 = vsub.s32 0, %v43
    %v45 = vrot.slane %v32, %v44
    %v46 = vlaneseq
    %v47 = vshrl.u32 %v46, 7
    %v48 = vsub.s32 1, %v47
    %v49 = vrot.slane %v32, %v48
    %v50 = vlaneseq
    %v51 = vshrl.u32 %v50, 7
    %v52 = vsub.s32 2, %v51
    %v53 = vrot.slane %v32, %v52
    %v54 = vlaneseq
    %v55 = vshrl.u32 %v54, 7
    %v56 = vsub.s32 3, %v55
    %v57 = vrot.slane %v32, %v56
    %v58 = vlaneseq
    %v59 = vshrl.u32 %v58, 7
    %v60 = vsub.s32 4, %v59
    %v61 = vrot.slane %v32, %v60
    %v62 = vlaneseq
    %v63 = vshrl.u32 %v62, 7
    %v64 = vsub.s32 5, %v63
    %v65 = vrot.slane %v32, %v64
    %v66 = vlaneseq
    %v67 = vshrl.u32 %v66, 7
    %v68 = vsub.s32 6, %v67
    %v69 = vrot.slane %v32, %v68
    %v70 = vlaneseq
    %v71 = vshrl.u32 %v70, 7
    %v72 = vsub.s32 7, %v71
    %v73 = vrot.slane %v32, %v72
    %v82 = vmin.f32 %v33, %v45
    %v83 = vmin.f32 %v34, %v49
    %v84 = vmin.f32 %v35, %v53
    %v85 = vmin.f32 %v36, %v57
    %v86 = vmin.f32 %v37, %v61
    %v87 = vmin.f32 %v38, %v65
    %v88 = vmin.f32 %v39, %v69
    %v89 = vmin.f32 %v40, %v73
    %90 = vst [vmem:[#allocation5] sm:$0xff] %v82
    %91 = vst [vmem:[#allocation5 + $0x8] sm:$0xff] %v83
    %92 = vst [vmem:[#allocation5 + $0x10] sm:$0xff] %v84
    %93 = vst [vmem:[#allocation5 + $0x18] sm:$0xff] %v85
    %94 = vst [vmem:[#allocation5 + $0x20] sm:$0xff] %v86
    %95 = vst [vmem:[#allocation5 + $0x28] sm:$0xff] %v87
    %96 = vst [vmem:[#allocation5 + $0x30] sm:$0xff] %v88
    %97 = vst [vmem:[#allocation5 + $0x38] sm:$0xff] %v89
    // Predicated region
    $region14: #{tpu_custom_call.1} parent=1 // pred_check
      _
    $region15: #{tpu_custom_call.1} parent=1 // pred_check_branch
      %99 = sbr.rel (0) target = $region17
    $region16: #{tpu_custom_call.1} parent=1 // pred_region
      %s101 = ssub.s32 1024, 1024
      %102 = vsyncadd [#allocation4], %s101
      %s104 = sshll.u32 [#allocation5], 4
      %s105 = int_to_ptr.vmem [resolvable:$true] %s104
      %107 = dma.vmem_to_hbm [thread:$0]  %s105, 1024, %s2, [#allocation4]
    $region17: #{tpu_custom_call.1} parent=1 // pred_fallthru
      _
    // Predicated region
    $region18: #{tpu_custom_call.1} parent=1 // pred_check
      _
    $region19: #{tpu_custom_call.1} parent=1 // pred_check_branch
      %109 = sbr.rel (0) target = $region21
    $region20: #{tpu_custom_call.1} parent=1 // pred_region
      %110 = dma.done [#allocation4], 1024
    $region21: #{tpu_custom_call.1} parent=1 // pred_fallthru
      _
    %111 = vsyncpa [#allocation3], 1
    %112 = vsyncpa [#allocation4], 1

</llo_original>
